<compile_context>
chip_gen: v7x
topology: tpu7x:2x2x1
jax: 0.10.0
libtpu: 0.0.40
codegen_flags: <defaults>
</compile_context>

<pallas_src>
import jax
import jax.numpy as jnp
from jax.experimental import pallas as pl
from jax.experimental.pallas import tpu as pltpu


def _split_kernel(x_ref, even_ref, odd_ref):
    # x_ref: (1, tile_L, 2*C) — adjacent (even, odd) sequence steps are packed
    # along the lane axis by the wrapper reshape, so the de-interleave is a
    # contiguous lane slice.
    c = even_ref.shape[-1]
    x = x_ref[...]
    even_ref[...] = x[..., :c]
    odd_ref[...] = x[..., c:]


_TARGET_ROWS = 512   # ~85% of HBM roofline in measured tile sweeps
_SUBLANE = 32        # tile multiple that is legal for fp32 / bf16 / int8 packing


def _pick_tile_l(half: int, c: int, itemsize: int) -> int:
    """Pick the sequence-tile size (rows of the L//2 axis) per grid step."""
    # Per row of a grid step: double-buffered input (2C wide) + two
    # double-buffered outputs (C wide each) => 8 * C * itemsize bytes.
    per_row = 8 * c * itemsize
    budget = 8 << 20  # conservative: fits v5e's 16 MiB scoped-VMEM default
    max_rows = max(_SUBLANE, budget // per_row)
    tile = min(half, _TARGET_ROWS, max_rows)
    if tile < half:
        # Tiled (non-full-extent) blocks must respect sublane packing rules.
        tile = max(_SUBLANE, (tile // _SUBLANE) * _SUBLANE)
    return int(tile)


def splitting(x: jnp.ndarray, *, force_pallas: bool = False,
              min_bytes_for_pallas: int = 1 << 20):
    """Split x[B, L, C] into (even, odd) along the sequence axis.

    even = x[:, ::2, :], odd = x[:, 1::2, :].  Requires L to be even
    (same as the shapes SCINet feeds this block).
    """
    B, L, C = x.shape
    assert L % 2 == 0, "seq_len must be even for Splitting"
    half = L // 2
    itemsize = jnp.dtype(x.dtype).itemsize
    nbytes = B * L * C * itemsize

    if not force_pallas and nbytes < min_bytes_for_pallas:
        # Per-step overhead + launch dwarfs the copy at tiny sizes; a fused
        # XLA slice is strictly faster here.
        return x[:, ::2, :], x[:, 1::2, :]

    # Free row-major metadata reshape: x2[b, i, :C] == x[b, 2i, :],
    #                                  x2[b, i, C:] == x[b, 2i+1, :].
    x2 = x.reshape(B, half, 2 * C)

    tile = _pick_tile_l(half, C, itemsize)
    grid = (B, pl.cdiv(half, tile))

    out_shapes = (
        jax.ShapeDtypeStruct((B, half, C), x.dtype),
        jax.ShapeDtypeStruct((B, half, C), x.dtype),
    )

    return pl.pallas_call(
        _split_kernel,
        out_shape=out_shapes,
        grid_spec=pltpu.PrefetchScalarGridSpec(
            num_scalar_prefetch=0,
            grid=grid,
            in_specs=[pl.BlockSpec((1, tile, 2 * C), lambda b, l: (b, l, 0))],
            out_specs=[
                pl.BlockSpec((1, tile, C), lambda b, l: (b, l, 0)),
                pl.BlockSpec((1, tile, C), lambda b, l: (b, l, 0)),
            ],
        ),
        compiler_params=pltpu.CompilerParams(
            # Pure data movement, no reduction axis: shard both axes across
            # TensorCores (matters on v7x with 2 TCs / chip).
            dimension_semantics=("parallel", "parallel"),
        ),
        cost_estimate=pl.CostEstimate(
            flops=0, transcendentals=0, bytes_accessed=2 * nbytes),
    )(x2)


if __name__ == "__main__":
    key = jax.random.PRNGKey(0)
    k0, k1, k2 = jax.random.split(key, 3)

    def check(x, **kw):
        even, odd = splitting(x, **kw)
        even = jax.block_until_ready(even)
        odd = jax.block_until_ready(odd)
        ref_even = x[:, ::2, :]
        ref_odd = x[:, 1::2, :]
        assert even.shape == ref_even.shape and odd.shape == ref_odd.shape
        assert jnp.array_equal(even, ref_even), "even split mismatch"
        assert jnp.array_equal(odd, ref_odd), "odd split mismatch"

    # Small deterministic example consistent with the module (B=2, L=16, C=8).
    # Force the Pallas path so the kernel itself is exercised at this size.
    x_small = jax.random.normal(k0, (2, 16, 8), dtype=jnp.float32)
    check(x_small, force_pallas=True)

    # fp32 case exercising the (batch, seq-tile) grid: half=1024, tile=512.
    x_med = jax.random.normal(k1, (2, 2048, 64), dtype=jnp.float32)
    check(x_med, force_pallas=True)

    # bf16 case (packed sublanes) with sequence tiling: half=2048, tile=512.
    x_bf16 = jax.random.normal(k2, (2, 4096, 96), dtype=jnp.float32).astype(
        jnp.bfloat16)
    check(x_bf16, force_pallas=True)

    print("KERNEL_OK")
</pallas_src>

<mosaic_0001>
module attributes {stable_mosaic.version = 11 : i64} {
  func.func @_split_kernel(%arg0: i32, %arg1: i32, %arg2: memref<1x8x16xf32, #tpu.memory_space<vmem>>, %arg3: memref<1x8x8xf32, #tpu.memory_space<vmem>>, %arg4: memref<1x8x8xf32, #tpu.memory_space<vmem>>) attributes {dimension_semantics = [#tpu.dimension_semantics<parallel>, #tpu.dimension_semantics<parallel>], iteration_bounds = array<i64: 2, 1>, scalar_prefetch = 0 : i64, scratch_operands = 0 : i64, tpu.core_type = #tpu.core_type<tc>, window_params = [{transform_indices = @transform_0, window_bounds = array<i64: 1, 8, 16>}, {transform_indices = @transform_1, window_bounds = array<i64: 1, 8, 8>}, {transform_indices = @transform_2, window_bounds = array<i64: 1, 8, 8>}]} {
    %c0 = arith.constant 0 : index
    %c0_0 = arith.constant 0 : index
    %c0_1 = arith.constant 0 : index
    %0 = vector.load %arg2[%c0, %c0_0, %c0_1] : memref<1x8x16xf32, #tpu.memory_space<vmem>>, vector<1x8x16xf32>
    %1 = vector.extract_strided_slice %0 {offsets = [0, 0, 0], sizes = [1, 8, 8], strides = [1, 1, 1]} : vector<1x8x16xf32> to vector<1x8x8xf32>
    %c0_2 = arith.constant 0 : index
    %c0_3 = arith.constant 0 : index
    %c0_4 = arith.constant 0 : index
    %2 = vector.load %arg3[%c0_2, %c0_3, %c0_4] : memref<1x8x8xf32, #tpu.memory_space<vmem>>, vector<1x8x8xf32>
    tpu.vector_store %arg3[%c0_2, %c0_3, %c0_4], %1 {strides = array<i32>} : memref<1x8x8xf32, #tpu.memory_space<vmem>>, vector<1x8x8xf32>,
    %3 = vector.extract_strided_slice %0 {offsets = [0, 0, 8], sizes = [1, 8, 8], strides = [1, 1, 1]} : vector<1x8x16xf32> to vector<1x8x8xf32>
    %c0_5 = arith.constant 0 : index
    %c0_6 = arith.constant 0 : index
    %c0_7 = arith.constant 0 : index
    %4 = vector.load %arg4[%c0_5, %c0_6, %c0_7] : memref<1x8x8xf32, #tpu.memory_space<vmem>>, vector<1x8x8xf32>
    tpu.vector_store %arg4[%c0_5, %c0_6, %c0_7], %3 {strides = array<i32>} : memref<1x8x8xf32, #tpu.memory_space<vmem>>, vector<1x8x8xf32>,
    return
  }
  func.func @transform_0(%arg0: i32, %arg1: i32) -> (i32, i32, i32) {
    %c0_i32 = arith.constant 0 : i32
    %c0_i32_0 = arith.constant 0 : i32
    return %arg0, %arg1, %c0_i32 : i32, i32, i32
  }
  func.func @transform_1(%arg0: i32, %arg1: i32) -> (i32, i32, i32) {
    %c0_i32 = arith.constant 0 : i32
    %c0_i32_0 = arith.constant 0 : i32
    return %arg0, %arg1, %c0_i32 : i32, i32, i32
  }
  func.func @transform_2(%arg0: i32, %arg1: i32) -> (i32, i32, i32) {
    %c0_i32 = arith.constant 0 : i32
    %c0_i32_0 = arith.constant 0 : i32
    return %arg0, %arg1, %c0_i32 : i32, i32, i32
  }
}

</mosaic_0001>

<llo_original>
// kernel: tpu_custom_call.1
$region0: #{tpu_custom_call.1}
  #allocation0 [shape = 'u32[]', space=smem, size = 0x4, offset = 0x4, fixed_abs, tag = 'smem constant byte address 0x4 - core index']
  #allocation1 [shape = 'u32[144,128]{1,0:T(1,128)}', space=vmem, size = 0x12000, scoped, tag = 'internal scratch']
  %s0 = inlined_call_operand.hbm [shape: f32[2,8,16], index: 0, kind: input, shape index: {}]
  %s1 = inlined_call_operand.hbm [shape: f32[2,8,8], index: 1, kind: output, shape index: {0}]
  %s2 = inlined_call_operand.hbm [shape: f32[2,8,8], index: 2, kind: output, shape index: {1}]
  %3 = xla_tuple %s1, %s2
  %s4 = sld [smem:[#allocation0]]
  $region49: #{tpu_custom_call.1} parent=0
    _
  %s6 = ssub.s32 1, %s4
  %s7 = scalar_select 0, %s6, %s4
  $region1: #{tpu_custom_call.1} parent=0
    #allocation2 [shape = 'u8[8192]{0}', space=vmem, size = 0x2000, scoped, tag = 'input window, operand 0']
    #allocation3 [shape = 's32[2]{0}', space=sflag, size = 0x8, scoped, tag = 'scoped memory for tpu_custom_call.1']
    #allocation4 [shape = 's32[2]{0}', space=sflag, size = 0x8, scoped, tag = 'scoped memory for tpu_custom_call.1']
    #allocation5 [shape = 'u8[8192]{0}', space=vmem, size = 0x2000, scoped, tag = 'output window, operand 0']
    #allocation6 [shape = 'u8[8192]{0}', space=vmem, size = 0x2000, scoped, tag = 'output window, operand 1']
    #allocation7 [shape = 's32[2]{0}', space=sflag, size = 0x8, scoped, tag = 'scoped memory for tpu_custom_call.1']
    %8 = vsyncpa [#allocation3], 0
    %s9 = scalar_lea.sflag [#allocation3], 1
    %10 = vsyncpa %s9, 0
    %11 = vsyncpa [#allocation4], 0
    %s12 = scalar_lea.sflag [#allocation4], 1
    %13 = vsyncpa %s12, 0
    %14 = vsyncpa [#allocation7], 0
    %s15 = scalar_lea.sflag [#allocation7], 1
    %16 = vsyncpa %s15, 0
    loop: start=0, step=1, limit=4
    $region2: #{tpu_custom_call.1} parent=1 // loop_pre_header
      _
    $region3: #{tpu_custom_call.1} parent=1 // loop_header
      %s18 = sphi 0, %s22
      %p19 = scmp.ge.s32.totalorder %s18, 4
      %s25 = sphi 0, %s37
      %s26 = sphi 0, %s33
      %s27 = sphi 0, %s25
      %s28 = sphi 0, %s26
      %s29 = sphi 0, %s27
      %s30 = sphi 0, %s28
      %s42 = sphi 0, %s44
      %s45 = sphi 0, %s42
      %s46 = sphi 0, %s45
      %s62 = sphi 0, %s46
      %s70 = sphi 0, %s72
      %s73 = sphi 0, %s70
      %s74 = sphi 0, %s73
      %s90 = sphi 0, %s74
      %s98 = sphi 0, %s100
      %s101 = sphi 0, %s98
      %s102 = sphi 0, %s101
      %s118 = sphi 0, %s102
    $region4: #{tpu_custom_call.1} parent=1 // loop_header_branch
      %21 = sbr.rel (%p19) target = $region8
    $region5: #{tpu_custom_call.1} parent=1 // loop_body
      %s23 = ssub.s32 %s18, 1
      %s24 = ssub.s32 %s18, 2
      %s31 = sadd.s32 1, %s26
      %p32 = scmp.ge.s32.totalorder %s31, 1
      %s33 = scalar_select %p32, 0, %s31
      %s34 = sadd.s32 1, %s25
      %s35 = scalar_select %p32, %s34, %s25
      %p36 = scmp.ge.s32.totalorder %s35, 2
      %s37 = scalar_select %p36, 0, %s35
      %s38 = ssub.s32 %s25, %s37
      %s39 = ssub.s32 %s26, %s33
      %s40 = sor.u32 %s38, %s39
      %p41 = scmp.eq.s32.totalorder %s40, 0
      %s43 = sadd.s32 %s42, 1
      %s44 = scalar_select %p41, %s42, %s43
      %p47 = pneg %p41
      %p48 = scmp.eq.s32.totalorder %s18, 1
      %p49 = por %p47, %p48
      %p50 = scmp.ne.s32.totalorder %s42, %s45
      %p51 = scmp.eq.s32.totalorder %s18, 0
      %p52 = por %p50, %p51
      %p53 = scmp.ne.s32.totalorder %s42, %s45
      %p54 = scmp.eq.s32.totalorder %s23, 1
      %p55 = por %p53, %p54
      %p56 = scmp.ne.s32.totalorder %s45, %s46
      %p57 = scmp.eq.s32.totalorder %s23, 0
      %p58 = por %p56, %p57
      %p59 = scmp.ne.s32.totalorder %s45, %s46
      %p60 = scmp.eq.s32.totalorder %s24, 1
      %p61 = por %p59, %p60
      %p63 = scmp.ne.s32.totalorder %s46, %s62
      %p64 = scmp.eq.s32.totalorder %s24, 0
      %p65 = por %p63, %p64
      %s66 = ssub.s32 %s25, %s37
      %s67 = ssub.s32 %s26, %s33
      %s68 = sor.u32 %s66, %s67
      %p69 = scmp.eq.s32.totalorder %s68, 0
      %s71 = sadd.s32 %s70, 1
      %s72 = scalar_select %p69, %s70, %s71
      %p75 = pneg %p69
      %p76 = scmp.eq.s32.totalorder %s18, 1
      %p77 = por %p75, %p76
      %p78 = scmp.ne.s32.totalorder %s70, %s73
      %p79 = scmp.eq.s32.totalorder %s18, 0
      %p80 = por %p78, %p79
      %p81 = scmp.ne.s32.totalorder %s70, %s73
      %p82 = scmp.eq.s32.totalorder %s23, 1
      %p83 = por %p81, %p82
      %p84 = scmp.ne.s32.totalorder %s73, %s74
      %p85 = scmp.eq.s32.totalorder %s23, 0
      %p86 = por %p84, %p85
      %p87 = scmp.ne.s32.totalorder %s73, %s74
      %p88 = scmp.eq.s32.totalorder %s24, 1
      %p89 = por %p87, %p88
      %p91 = scmp.ne.s32.totalorder %s74, %s90
      %p92 = scmp.eq.s32.totalorder %s24, 0
      %p93 = por %p91, %p92
      %s94 = ssub.s32 %s25, %s37
      %s95 = ssub.s32 %s26, %s33
      %s96 = sor.u32 %s94, %s95
      %p97 = scmp.eq.s32.totalorder %s96, 0
      %s99 = sadd.s32 %s98, 1
      %s100 = scalar_select %p97, %s98, %s99
      %p103 = pneg %p97
      %p104 = scmp.eq.s32.totalorder %s18, 1
      %p105 = por %p103, %p104
      %p106 = scmp.ne.s32.totalorder %s98, %s101
      %p107 = scmp.eq.s32.totalorder %s18, 0
      %p108 = por %p106, %p107
      %p109 = scmp.ne.s32.totalorder %s98, %s101
      %p110 = scmp.eq.s32.totalorder %s23, 1
      %p111 = por %p109, %p110
      %p112 = scmp.ne.s32.totalorder %s101, %s102
      %p113 = scmp.eq.s32.totalorder %s23, 0
      %p114 = por %p112, %p113
      %p115 = scmp.ne.s32.totalorder %s101, %s102
      %p116 = scmp.eq.s32.totalorder %s24, 1
      %p117 = por %p115, %p116
      %p119 = scmp.ne.s32.totalorder %s102, %s118
      %p120 = scmp.eq.s32.totalorder %s24, 0
      %p121 = por %p119, %p120
      %p122 = scmp.le.s32.totalorder 1, %s18
      %p123 = scmp.lt.s32.totalorder %s18, 3
      %p124 = pnand %p122, %p123
      %p125 = pneg %p124
      // Predicated region
      $region9: #{tpu_custom_call.1} parent=5 // pred_check
        _
      $region10: #{tpu_custom_call.1} parent=5 // pred_check_branch
        %127 = sbr.rel (%p124) target = $region12
      $region11: #{tpu_custom_call.1} parent=5 // pred_region
        %s128 = ssub.s32 %s18, 1
      $region12: #{tpu_custom_call.1} parent=5 // pred_fallthru
        _
      %p129 = scmp.lt.s32.totalorder %s18, 2
      // Predicated region
      $region13: #{tpu_custom_call.1} parent=5 // pred_check
        %p130 = pneg %p129
      $region14: #{tpu_custom_call.1} parent=5 // pred_check_branch
        %132 = sbr.rel (%p130) target = $region16
      $region15: #{tpu_custom_call.1} parent=5 // pred_region
        // Predicated region
        $region17: #{tpu_custom_call.1} parent=15 // pred_check
          %p133 = pneg %p52
        $region18: #{tpu_custom_call.1} parent=15 // pred_check_branch
          %135 = sbr.rel (%p133) target = $region20
        $region19: #{tpu_custom_call.1} parent=15 // pred_region
          %s136 = sand.u32 %s42, 1
          %s137 = scalar_lea.sflag [#allocation3], %s136
          %s138 = sand.u32 %s42, 1
          %s139 = smul.addr %s138, 8
          %s140 = scalar_lea.vmem [#allocation2], %s139
          %s142 = ssub.s32 128, 128
          %143 = vsyncadd %s137, %s142
          %s144 = sadd.s32 %s26, %s25
          %s145 = smul.addr %s144, 128
          %s146 = scalar_lea.hbm %s0, %s145
          %s148 = sshll.u32 %s140, 4
          %s149 = int_to_ptr.vmem [resolvable:$true] %s148
          %151 = dma.hbm_to_vmem [thread:$0]  %s146, 128, %s149, %s137
        $region20: #{tpu_custom_call.1} parent=15 // pred_fallthru
          _
      $region16: #{tpu_custom_call.1} parent=5 // pred_fallthru
        _
      %p152 = scmp.le.s32.totalorder 1, %s18
      %p153 = scmp.lt.s32.totalorder %s18, 3
      %p154 = pnand %p152, %p153
      %p155 = pneg %p154
      // Predicated region
      $region21: #{tpu_custom_call.1} parent=5 // pred_check
        _
      $region22: #{tpu_custom_call.1} parent=5 // pred_check_branch
        %157 = sbr.rel (%p154) target = $region24
      $region23: #{tpu_custom_call.1} parent=5 // pred_region
        %s158 = ssub.s32 %s18, 1
        %s159 = sand.u32 %s45, 1
        %s160 = scalar_lea.sflag [#allocation3], %s159
        %s161 = sand.u32 %s45, 1
        %s162 = smul.addr %s161, 8
        %s163 = scalar_lea.vmem [#allocation2], %s162
        // Predicated region
        $region25: #{tpu_custom_call.1} parent=23 // pred_check
          %p164 = pneg %p58
        $region26: #{tpu_custom_call.1} parent=23 // pred_check_branch
          %166 = sbr.rel (%p164) target = $region28
        $region27: #{tpu_custom_call.1} parent=23 // pred_region
          %167 = dma.done %s160, 128
        $region28: #{tpu_custom_call.1} parent=23 // pred_fallthru
          _
        %s168 = sand.u32 %s45, 1
        %s169 = scalar_lea.sflag [#allocation3], %s168
        %s170 = sand.u32 %s45, 1
        %s171 = smul.addr %s170, 8
        %s172 = scalar_lea.vmem [#allocation2], %s171
        %p173 = pneg %p58
        %p174 = pneg %p55
        %p175 = pneg %p86
        %p176 = pneg %p83
        %s177 = sand.u32 %s73, 1
        %s178 = scalar_lea.sflag [#allocation4], %s177
        %s179 = sand.u32 %s73, 1
        %s180 = smul.addr %s179, 8
        %s181 = scalar_lea.vmem [#allocation5], %s180
        %p182 = pneg %p114
        %p183 = pneg %p111
        %s184 = sand.u32 %s101, 1
        %s185 = scalar_lea.sflag [#allocation7], %s184
        %s186 = sand.u32 %s101, 1
        %s187 = smul.addr %s186, 8
        %s188 = scalar_lea.vmem [#allocation6], %s187
        %v189 = vld [vmem:[%s163] sm:$0xff]
        %vm190 = vcmask 64512
        %191 = vst.msk [vmem:[%s181] sm:$0xff] %vm190, %v189
        %193 = vrot.lane.b32.xlu0 %v189, 120
        %v194 = vpop.permute.xlu0 %193
        %196 = vst.msk [vmem:[%s188] sm:$0xff] %vm190, %v194
        %s197 = sand.u32 %s73, 1
        %s198 = scalar_lea.sflag [#allocation4], %s197
        %s199 = sand.u32 %s73, 1
        %s200 = smul.addr %s199, 8
        %s201 = scalar_lea.vmem [#allocation5], %s200
        %s202 = sand.u32 %s101, 1
        %s203 = scalar_lea.sflag [#allocation7], %s202
        %s204 = sand.u32 %s101, 1
        %s205 = smul.addr %s204, 8
        %s206 = scalar_lea.vmem [#allocation6], %s205
        // Predicated region
        $region29: #{tpu_custom_call.1} parent=23 // pred_check
          %p207 = pneg %p83
        $region30: #{tpu_custom_call.1} parent=23 // pred_check_branch
          %209 = sbr.rel (%p207) target = $region32
        $region31: #{tpu_custom_call.1} parent=23 // pred_region
          %s211 = ssub.s32 128, 128
          %212 = vsyncadd %s198, %s211
          %s213 = sadd.s32 %s28, %s27
          %s214 = smul.addr %s213, 128
          %s215 = scalar_lea.hbm %s1, %s214
          %s217 = sshll.u32 %s201, 4
          %s218 = int_to_ptr.vmem [resolvable:$true] %s217
          %220 = dma.vmem_to_hbm [thread:$0]  %s218, 128, %s215, %s198
        $region32: #{tpu_custom_call.1} parent=23 // pred_fallthru
          _
        // Predicated region
        $region33: #{tpu_custom_call.1} parent=23 // pred_check
          %p221 = pneg %p111
        $region34: #{tpu_custom_call.1} parent=23 // pred_check_branch
          %223 = sbr.rel (%p221) target = $region36
        $region35: #{tpu_custom_call.1} parent=23 // pred_region
          %s225 = ssub.s32 128, 128
          %226 = vsyncadd %s203, %s225
          %s227 = sadd.s32 %s28, %s27
          %s228 = smul.addr %s227, 128
          %s229 = scalar_lea.hbm %s2, %s228
          %s231 = sshll.u32 %s206, 4
          %s232 = int_to_ptr.vmem [resolvable:$true] %s231
          %234 = dma.vmem_to_hbm [thread:$0]  %s232, 128, %s229, %s203
        $region36: #{tpu_custom_call.1} parent=23 // pred_fallthru
          _
      $region24: #{tpu_custom_call.1} parent=5 // pred_fallthru
        _
      %p235 = scmp.le.s32.totalorder 2, %s18
      // Predicated region
      $region37: #{tpu_custom_call.1} parent=5 // pred_check
        %p236 = pneg %p235
      $region38: #{tpu_custom_call.1} parent=5 // pred_check_branch
        %238 = sbr.rel (%p236) target = $region40
      $region39: #{tpu_custom_call.1} parent=5 // pred_region
        %s239 = ssub.s32 %s18, 2
        // Predicated region
        $region41: #{tpu_custom_call.1} parent=39 // pred_check
          %p240 = pneg %p89
        $region42: #{tpu_custom_call.1} parent=39 // pred_check_branch
          %242 = sbr.rel (%p240) target = $region44
        $region43: #{tpu_custom_call.1} parent=39 // pred_region
          %s243 = sand.u32 %s74, 1
          %s244 = scalar_lea.sflag [#allocation4], %s243
          %s245 = sand.u32 %s74, 1
          %s246 = smul.addr %s245, 8
          %s247 = scalar_lea.vmem [#allocation5], %s246
          %248 = dma.done %s244, 128
        $region44: #{tpu_custom_call.1} parent=39 // pred_fallthru
          _
        // Predicated region
        $region45: #{tpu_custom_call.1} parent=39 // pred_check
          %p249 = pneg %p117
        $region46: #{tpu_custom_call.1} parent=39 // pred_check_branch
          %251 = sbr.rel (%p249) target = $region48
        $region47: #{tpu_custom_call.1} parent=39 // pred_region
          %s252 = sand.u32 %s102, 1
          %s253 = scalar_lea.sflag [#allocation7], %s252
          %s254 = sand.u32 %s102, 1
          %s255 = smul.addr %s254, 8
          %s256 = scalar_lea.vmem [#allocation6], %s255
          %257 = dma.done %s253, 128
        $region48: #{tpu_custom_call.1} parent=39 // pred_fallthru
          _
      $region40: #{tpu_custom_call.1} parent=5 // pred_fallthru
        _
    $region6: #{tpu_custom_call.1} parent=1 // loop_footer
      %s22 = sadd.s32 1, %s18
    $region7: #{tpu_custom_call.1} parent=1 // loop_footer_branch
      %17 = sbr.rel target = $region3
    $region8: #{tpu_custom_call.1} parent=1 // loop_exit
      _
    %258 = vsyncpa [#allocation3], 1
    %s259 = scalar_lea.sflag [#allocation3], 1
    %260 = vsyncpa %s259, 1
    %261 = vsyncpa [#allocation4], 1
    %s262 = scalar_lea.sflag [#allocation4], 1
    %263 = vsyncpa %s262, 1
    %264 = vsyncpa [#allocation7], 1
    %s265 = scalar_lea.sflag [#allocation7], 1
    %266 = vsyncpa %s265, 1

</llo_original>
